<compile_context>
chip_gen: v7x
topology: tpu7x:2x2x1
jax: 0.10.0
libtpu: 0.0.40
codegen_flags: <defaults>
</compile_context>

<pallas_src>
import functools

import jax
import jax.numpy as jnp
from jax.experimental import pallas as pl
from jax.experimental.pallas import tpu as pltpu


def _cbfl_kernel(logits_ref, targets_ref, alpha_ref, out_ref, acc_ref,
                 *, gamma, n_total, tiles_per_slice):
    # logits_ref:  (C, tm)    float  classes on sublanes, batch on lanes
    # targets_ref: (1, tm)    int32  lane-dense targets
    # alpha_ref:   (C, 1)     f32    class-balance weights (resident across grid)
    # out_ref:     (1, 1, 1)  f32    per-parallel-slice partial sum
    # acc_ref:     (1, tm)    f32    per-lane running loss accumulator (VMEM)
    p = pl.program_id(0)          # parallel slice (megacore split on dual-TC chips)
    i = pl.program_id(1)          # reduction over batch tiles within the slice
    tm = acc_ref.shape[1]

    @pl.when(i == 0)
    def _():
        acc_ref[...] = jnp.zeros_like(acc_ref)

    logits = logits_ref[...].astype(jnp.float32)       # (C, tm)
    tgt = targets_ref[...]                             # (1, tm) int32
    alpha = alpha_ref[...].astype(jnp.float32)         # (C, 1)

    # Numerically-stable log-softmax over the class axis (axis 0, small C).
    m = jnp.max(logits, axis=0, keepdims=True)                          # (1, tm)
    shifted = logits - m
    lse = jnp.log(jnp.sum(jnp.exp(shifted), axis=0, keepdims=True))     # (1, tm)
    log_probs = shifted - lse                                           # (C, tm)

    # One-hot select of the target class (no dynamic gather on TPU): one VPU
    # compare per class row against the lane-dense target vector.
    row = jax.lax.broadcasted_iota(jnp.int32, log_probs.shape, 0)       # (C, tm)
    onehot = (row == tgt).astype(jnp.float32)                           # (C, tm)

    log_p_t = jnp.sum(log_probs * onehot, axis=0, keepdims=True)        # (1, tm)
    p_t = jnp.exp(log_p_t)
    one_minus_pt = 1.0 - p_t

    # Focal term: integer gamma -> repeated multiply on the VALU
    # (float pow lowers to exp(gamma*log(x)) -> 2 extra EUP ops per sample).
    g = float(gamma)
    if g == 2.0:
        focal = one_minus_pt * one_minus_pt
    elif g.is_integer() and 0.0 <= g <= 8.0:
        focal = jnp.ones_like(one_minus_pt)
        for _ in range(int(g)):
            focal = focal * one_minus_pt
    else:
        # Clamp for cheap insurance against a tiny negative from rounding.
        focal = jnp.maximum(one_minus_pt, 0.0) ** g

    alpha_t = jnp.sum(alpha * onehot, axis=0, keepdims=True)            # (1, tm)
    loss = -alpha_t * focal * log_p_t                                   # (1, tm)

    # Mask padded / out-of-range batch columns (ragged last tile, duplicated
    # clamped tiles from the parallel split).  This is a select, not a multiply,
    # so NaN/Inf from garbage lanes cannot leak.
    # Note: col is int32 -> fine for N < 2^31.
    tile_idx = p * tiles_per_slice + i
    col = jax.lax.broadcasted_iota(jnp.int32, loss.shape, 1) + tile_idx * tm
    loss = jnp.where(col < n_total, loss, 0.0)

    # Lane-dense elementwise accumulate (pure VPU in the steady state).
    acc_ref[...] += loss

    # Single cross-lane reduce + scalar store only on the last tile of the slice.
    @pl.when(i == pl.num_programs(1) - 1)
    def _():
        out_ref[...] = jnp.sum(acc_ref[...]).reshape(1, 1, 1)


def _tpu_defaults():
    """Generation-aware VMEM capacity and TensorCore count (best effort)."""
    vmem_cap = 64 * 1024 * 1024      # conservative fallback (v7x physical VMEM)
    num_tc = 1
    try:
        info = pltpu.get_tpu_info()
        cap = getattr(info, "vmem_capacity_bytes", None)
        if cap:
            vmem_cap = int(cap)
    except Exception:
        pass
    try:
        kind = jax.devices()[0].device_kind.lower()
        if "v7" in kind or "7x" in kind:
            num_tc = 2               # dual TensorCore per chip
    except Exception:
        pass
    return vmem_cap, num_tc


def class_balanced_focal_loss(logits, targets, samples_per_class=None,
                              alpha=None, beta=0.9999, gamma=2.0,
                              reduction='mean', tm=None, num_parallel=None):
    """Class-balanced focal loss. logits (N, C) float (f32 or bf16), targets (N,) int."""
    n, c = logits.shape

    # --- class-balance weights (plain-JAX glue, O(C)) ---
    if alpha is not None:
        cb_alpha = jnp.asarray(alpha, dtype=jnp.float32)
    elif samples_per_class is not None:
        spc = jnp.asarray(samples_per_class, dtype=jnp.float32)
        effective_num = 1.0 - jnp.power(jnp.float32(beta), spc)
        weights = (1.0 - beta) / effective_num
        cb_alpha = weights / jnp.sum(weights) * c
    else:
        cb_alpha = jnp.ones((c,), dtype=jnp.float32)
    cb_alpha = cb_alpha.reshape(c, 1).astype(jnp.float32)               # (C, 1)

    # --- generation-aware defaults ---
    vmem_cap, n_tc = _tpu_defaults()
    if num_parallel is None:
        num_parallel = n_tc          # 2 only on dual-TC chips (v7x); 1 on v5e/v6e
    # ~48 MiB scoped on v7x (64 MiB physical), 64 MiB on v5e/v6e (128 MiB physical).
    vmem_limit = int(min(vmem_cap * 3 // 4, 64 * 1024 * 1024))

    # --- lane-dense layout: batch on lanes, classes on sublanes ---
    logits_t = jnp.transpose(logits)                                    # (C, N)
    targets_r = targets.astype(jnp.int32).reshape(1, n)                 # (1, N)

    # Only pad when N < 128 (tiny one-off copy); larger ragged tails are handled
    # by Pallas partial boundary blocks + the in-kernel mask (no full-array pad).
    n_lane = n
    if n_lane < 128:
        pad = 128 - n_lane
        logits_t = jnp.pad(logits_t, ((0, 0), (0, pad)))
        targets_r = jnp.pad(targets_r, ((0, 0), (0, pad)))
        n_lane = 128

    # --- tile sizing from real VMEM accounting (8-sublane padding included) ---
    # (C<8, tm) f32 and (1, tm) i32 blocks each occupy 32*tm bytes in VMEM, so
    # steady state ~ 2*32*tm (logits dbuf) + 2*32*tm (targets dbuf) + 32*tm (acc)
    # ~ 160*tm bytes.  Leave headroom inside the scoped limit.
    if tm is None:
        tm_budget = (vmem_limit * 3 // 4) // 160
        tm_budget = max(512, (tm_budget // 512) * 512)
        tm = min(131072, tm_budget)
    tm_eff = max(128, min(int(tm), (n_lane // 128) * 128))
    tm_eff = (tm_eff // 128) * 128                                      # multiple of 128

    total_tiles = (n_lane + tm_eff - 1) // tm_eff
    tiles_per_slice = (total_tiles + num_parallel - 1) // num_parallel

    kernel = functools.partial(_cbfl_kernel, gamma=float(gamma),
                               n_total=n, tiles_per_slice=tiles_per_slice)

    def tile_map(p, i):
        # Clamp so no block starts entirely out of bounds; duplicated (clamped)
        # tiles are fully masked in-kernel via col >= n_total.
        return (0, jnp.minimum(p * tiles_per_slice + i, total_tiles - 1))

    partial_sums = pl.pallas_call(
        kernel,
        out_shape=jax.ShapeDtypeStruct((num_parallel, 1, 1), jnp.float32),
        grid_spec=pltpu.PrefetchScalarGridSpec(
            num_scalar_prefetch=0,
            grid=(num_parallel, tiles_per_slice),
            in_specs=[
                # logits tile: classes full-extent on sublanes, tm batch lanes
                pl.BlockSpec((c, tm_eff), tile_map),
                # lane-dense targets tile
                pl.BlockSpec((1, tm_eff), tile_map),
                # class-balance weights, resident across the whole grid
                pl.BlockSpec((c, 1), lambda p, i: (0, 0)),
            ],
            out_specs=pl.BlockSpec((1, 1, 1), lambda p, i: (p, 0, 0)),
            scratch_shapes=[pltpu.VMEM((1, tm_eff), jnp.float32)],
        ),
        compiler_params=pltpu.CompilerParams(
            # TODO(synk): verify "parallel" actually shards across the 2 TCs on
            # v7x (else switch that axis to pltpu.CORE_PARALLEL); harmless
            # elsewhere since num_parallel defaults to 1 on single-TC chips.
            dimension_semantics=("parallel", "arbitrary"),
            vmem_limit_bytes=vmem_limit,
        ),
    )(logits_t, targets_r, cb_alpha)

    total = jnp.sum(partial_sums)
    if reduction == 'mean':
        return total / jnp.float32(n)
    elif reduction == 'sum':
        return total
    else:
        # TODO(synk): reduction='none' (per-sample (N,) output) not implemented in the kernel.
        raise ValueError(f"Unsupported reduction type: {reduction}")


def _reference(logits, targets, samples_per_class, beta=0.9999, gamma=2.0,
               reduction='mean'):
    n, c = logits.shape
    spc = jnp.asarray(samples_per_class, dtype=jnp.float32)
    effective_num = 1.0 - jnp.power(jnp.float32(beta), spc)
    weights = (1.0 - beta) / effective_num
    cb_alpha = weights / jnp.sum(weights) * c
    log_probs = jax.nn.log_softmax(logits.astype(jnp.float32), axis=1)
    log_p_t = jnp.take_along_axis(log_probs, targets[:, None], axis=1)[:, 0]
    p_t = jnp.exp(log_p_t)
    focal = (1.0 - p_t) ** gamma
    alpha_t = cb_alpha[targets]
    loss = -alpha_t * focal * log_p_t
    return jnp.mean(loss) if reduction == 'mean' else jnp.sum(loss)


if __name__ == "__main__":
    key = jax.random.PRNGKey(0)

    # Case 1: small batch (single tile, lane padding path).
    k1, k2 = jax.random.split(key)
    N, C = 32, 4
    logits = jax.random.normal(k1, (N, C), dtype=jnp.float32) * 2.0
    targets = jax.random.randint(k2, (N,), 0, C, dtype=jnp.int32)
    samples_per_class = [1000.0, 300.0, 50.0, 10.0]

    loss = jax.block_until_ready(
        class_balanced_focal_loss(logits, targets,
                                  samples_per_class=samples_per_class,
                                  beta=0.9999, gamma=2.0))
    ref = jax.block_until_ready(
        _reference(logits, targets, samples_per_class, beta=0.9999, gamma=2.0))
    assert jnp.allclose(loss, ref, rtol=1e-5, atol=1e-5), (loss, ref)

    # Case 2: batch not a multiple of 128 -> multi-tile accumulation + ragged tail mask.
    k3, k4 = jax.random.split(k2)
    N2 = 300
    logits2 = jax.random.normal(k3, (N2, C), dtype=jnp.float32) * 2.0
    targets2 = jax.random.randint(k4, (N2,), 0, C, dtype=jnp.int32)

    loss2 = jax.block_until_ready(
        class_balanced_focal_loss(logits2, targets2,
                                  samples_per_class=samples_per_class,
                                  beta=0.9999, gamma=2.0, reduction='sum'))
    ref2 = jax.block_until_ready(
        _reference(logits2, targets2, samples_per_class, beta=0.9999, gamma=2.0,
                   reduction='sum'))
    assert jnp.allclose(loss2, ref2, rtol=1e-5, atol=1e-4), (loss2, ref2)

    print("KERNEL_OK")
</pallas_src>

<mosaic_0001>
module attributes {stable_mosaic.version = 11 : i64} {
  func.func @_cbfl_kernel(%arg0: i32, %arg1: i32, %arg2: memref<4x128xf32, #tpu.memory_space<vmem>>, %arg3: memref<1x128xi32, #tpu.memory_space<vmem>>, %arg4: memref<4x1xf32, #tpu.memory_space<vmem>>, %arg5: memref<1x1x1xf32, #tpu.memory_space<vmem>>, %arg6: memref<1x128xf32, #tpu.memory_space<vmem>>) attributes {dimension_semantics = [#tpu.dimension_semantics<parallel>, #tpu.dimension_semantics<arbitrary>], iteration_bounds = array<i64: 1, 1>, scalar_prefetch = 0 : i64, scratch_operands = 1 : i64, tpu.core_type = #tpu.core_type<tc>, window_params = [{transform_indices = @transform_0, window_bounds = array<i64: 4, 128>}, {transform_indices = @transform_1, window_bounds = array<i64: 1, 128>}, {pipeline_mode = #tpu.pipeline_mode<synchronous>, transform_indices = @transform_2, window_bounds = array<i64: 4, 1>}, {transform_indices = @transform_3, window_bounds = array<i64: 1, 1, 1>}]} {
    %c0_i32 = arith.constant 0 : i32
    %0 = arith.cmpi eq, %arg1, %c0_i32 : i32
    %1 = arith.extui %0 : i1 to i32
    %c0_i32_0 = arith.constant 0 : i32
    %2 = arith.cmpi ne, %1, %c0_i32_0 : i32
    scf.if %2 {
      %cst_18 = arith.constant 0.000000e+00 : f32
      %52 = vector.broadcast %cst_18 : f32 to vector<1x128xf32>
      %c0_19 = arith.constant 0 : index
      %c0_20 = arith.constant 0 : index
      %53 = vector.load %arg6[%c0_19, %c0_20] : memref<1x128xf32, #tpu.memory_space<vmem>>, vector<1x128xf32>
      tpu.vector_store %arg6[%c0_19, %c0_20], %52 {strides = array<i32>} : memref<1x128xf32, #tpu.memory_space<vmem>>, vector<1x128xf32>,
    } else {
    }
    %c0 = arith.constant 0 : index
    %c0_1 = arith.constant 0 : index
    %3 = vector.load %arg2[%c0, %c0_1] : memref<4x128xf32, #tpu.memory_space<vmem>>, vector<4x128xf32>
    %c0_2 = arith.constant 0 : index
    %c0_3 = arith.constant 0 : index
    %4 = vector.load %arg3[%c0_2, %c0_3] : memref<1x128xi32, #tpu.memory_space<vmem>>, vector<1x128xi32>
    %c0_4 = arith.constant 0 : index
    %c0_5 = arith.constant 0 : index
    %5 = vector.load %arg4[%c0_4, %c0_5] : memref<4x1xf32, #tpu.memory_space<vmem>>, vector<4x1xf32>
    %cst = arith.constant dense<0xFF800000> : vector<128xf32>
    %6 = vector.multi_reduction <maximumf>, %3, %cst [0] : vector<4x128xf32> to vector<128xf32>
    %7 = vector.shape_cast %6 : vector<128xf32> to vector<1x128xf32>
    %8 = vector.broadcast %7 : vector<1x128xf32> to vector<4x128xf32>
    %9 = arith.subf %3, %8 : vector<4x128xf32>
    %10 = math.exp %9 : vector<4x128xf32>
    %cst_6 = arith.constant dense<0.000000e+00> : vector<128xf32>
    %11 = vector.multi_reduction <add>, %10, %cst_6 [0] : vector<4x128xf32> to vector<128xf32>
    %12 = vector.shape_cast %11 : vector<128xf32> to vector<1x128xf32>
    %13 = math.log %12 : vector<1x128xf32>
    %14 = vector.broadcast %13 : vector<1x128xf32> to vector<4x128xf32>
    %15 = arith.subf %9, %14 : vector<4x128xf32>
    %16 = tpu.iota {dimensions = array<i32: 0>} : vector<4x128xi32>
    %17 = vector.broadcast %4 : vector<1x128xi32> to vector<4x128xi32>
    %18 = arith.cmpi eq, %16, %17 : vector<4x128xi32>
    %19 = arith.extui %18 : vector<4x128xi1> to vector<4x128xi32>
    %20 = arith.sitofp %19 : vector<4x128xi32> to vector<4x128xf32>
    %21 = arith.mulf %15, %20 : vector<4x128xf32>
    %cst_7 = arith.constant dense<0.000000e+00> : vector<128xf32>
    %22 = vector.multi_reduction <add>, %21, %cst_7 [0] : vector<4x128xf32> to vector<128xf32>
    %23 = vector.shape_cast %22 : vector<128xf32> to vector<1x128xf32>
    %24 = math.exp %23 : vector<1x128xf32>
    %cst_8 = arith.constant 1.000000e+00 : f32
    %25 = vector.broadcast %cst_8 : f32 to vector<1x128xf32>
    %26 = arith.subf %25, %24 : vector<1x128xf32>
    %27 = arith.mulf %26, %26 : vector<1x128xf32>
    %28 = vector.broadcast %5 : vector<4x1xf32> to vector<4x128xf32>
    %29 = arith.mulf %28, %20 : vector<4x128xf32>
    %cst_9 = arith.constant dense<0.000000e+00> : vector<128xf32>
    %30 = vector.multi_reduction <add>, %29, %cst_9 [0] : vector<4x128xf32> to vector<128xf32>
    %31 = vector.shape_cast %30 : vector<128xf32> to vector<1x128xf32>
    %cst_10 = arith.constant 0.000000e+00 : f32
    %32 = vector.broadcast %cst_10 : f32 to vector<1x128xf32>
    %33 = arith.subf %32, %31 : vector<1x128xf32>
    %34 = arith.mulf %33, %27 : vector<1x128xf32>
    %35 = arith.mulf %34, %23 : vector<1x128xf32>
    %c1_i32 = arith.constant 1 : i32
    %36 = arith.muli %arg0, %c1_i32 : i32
    %37 = arith.addi %36, %arg1 : i32
    %38 = tpu.iota {dimensions = array<i32: 1>} : vector<1x128xi32>
    %c128_i32 = arith.constant 128 : i32
    %39 = arith.muli %37, %c128_i32 : i32
    %40 = vector.broadcast %39 : i32 to vector<1x128xi32>
    %41 = arith.addi %38, %40 : vector<1x128xi32>
    %c32_i32 = arith.constant 32 : i32
    %42 = vector.broadcast %c32_i32 : i32 to vector<1x128xi32>
    %43 = arith.cmpi slt, %41, %42 : vector<1x128xi32>
    %cst_11 = arith.constant 0.000000e+00 : f32
    %44 = vector.broadcast %cst_11 : f32 to vector<1x128xf32>
    %45 = arith.select %43, %35, %44 : vector<1x128xi1>, vector<1x128xf32>
    %c0_12 = arith.constant 0 : index
    %c0_13 = arith.constant 0 : index
    %46 = vector.load %arg6[%c0_12, %c0_13] : memref<1x128xf32, #tpu.memory_space<vmem>>, vector<1x128xf32>
    %47 = arith.addf %46, %45 : vector<1x128xf32>
    %c0_14 = arith.constant 0 : index
    %c0_15 = arith.constant 0 : index
    %48 = vector.load %arg6[%c0_14, %c0_15] : memref<1x128xf32, #tpu.memory_space<vmem>>, vector<1x128xf32>
    tpu.vector_store %arg6[%c0_14, %c0_15], %47 {strides = array<i32>} : memref<1x128xf32, #tpu.memory_space<vmem>>, vector<1x128xf32>,
    %c0_i32_16 = arith.constant 0 : i32
    %49 = arith.cmpi eq, %arg1, %c0_i32_16 : i32
    %50 = arith.extui %49 : i1 to i32
    %c0_i32_17 = arith.constant 0 : i32
    %51 = arith.cmpi ne, %50, %c0_i32_17 : i32
    scf.if %51 {
      %c0_18 = arith.constant 0 : index
      %c0_19 = arith.constant 0 : index
      %52 = vector.load %arg6[%c0_18, %c0_19] : memref<1x128xf32, #tpu.memory_space<vmem>>, vector<1x128xf32>
      %53 = vector.shape_cast %52 : vector<1x128xf32> to vector<1x1x128xf32>
      %cst_20 = arith.constant dense<0.000000e+00> : vector<1xf32>
      %54 = vector.multi_reduction <add>, %53, %cst_20 [1, 2] : vector<1x1x128xf32> to vector<1xf32>
      %55 = vector.shape_cast %54 : vector<1xf32> to vector<1x1x1xf32>
      %56 = vector.extract %55[0, 0, 0] : f32 from vector<1x1x1xf32>
      %57 = vector.broadcast %56 : f32 to vector<1x1x1xf32>
      %c0_21 = arith.constant 0 : index
      %c0_22 = arith.constant 0 : index
      %c0_23 = arith.constant 0 : index
      %58 = vector.load %arg5[%c0_21, %c0_22, %c0_23] : memref<1x1x1xf32, #tpu.memory_space<vmem>>, vector<1x1x1xf32>
      tpu.vector_store %arg5[%c0_21, %c0_22, %c0_23], %57 {strides = array<i32>} : memref<1x1x1xf32, #tpu.memory_space<vmem>>, vector<1x1x1xf32>,
    } else {
    }
    return
  }
  func.func @transform_0(%arg0: i32, %arg1: i32) -> (i32, i32) {
    %c1_i32 = arith.constant 1 : i32
    %0 = arith.muli %arg0, %c1_i32 : i32
    %1 = arith.addi %0, %arg1 : i32
    %c0_i32 = arith.constant 0 : i32
    %2 = arith.minsi %1, %c0_i32 : i32
    %c0_i32_0 = arith.constant 0 : i32
    %c0_i32_1 = arith.constant 0 : i32
    return %c0_i32_0, %2 : i32, i32
  }
  func.func @transform_1(%arg0: i32, %arg1: i32) -> (i32, i32) {
    %c1_i32 = arith.constant 1 : i32
    %0 = arith.muli %arg0, %c1_i32 : i32
    %1 = arith.addi %0, %arg1 : i32
    %c0_i32 = arith.constant 0 : i32
    %2 = arith.minsi %1, %c0_i32 : i32
    %c0_i32_0 = arith.constant 0 : i32
    %c0_i32_1 = arith.constant 0 : i32
    return %c0_i32_0, %2 : i32, i32
  }
  func.func @transform_2(%arg0: i32, %arg1: i32) -> (i32, i32) {
    %c0_i32 = arith.constant 0 : i32
    %c0_i32_0 = arith.constant 0 : i32
    %c0_i32_1 = arith.constant 0 : i32
    return %c0_i32, %c0_i32_0 : i32, i32
  }
  func.func @transform_3(%arg0: i32, %arg1: i32) -> (i32, i32, i32) {
    %c0_i32 = arith.constant 0 : i32
    %c0_i32_0 = arith.constant 0 : i32
    %c0_i32_1 = arith.constant 0 : i32
    return %arg0, %c0_i32, %c0_i32_0 : i32, i32, i32
  }
}

</mosaic_0001>

<llo_original>
// kernel: tpu_custom_call.1
$region0: #{tpu_custom_call.1}
  #allocation0 [shape = 'u32[]', space=smem, size = 0x4, offset = 0x4, fixed_abs, tag = 'smem constant byte address 0x4 - core index']
  #allocation1 [shape = 'u32[144,128]{1,0:T(1,128)}', space=vmem, size = 0x12000, scoped, tag = 'internal scratch']
  #allocation2 [shape = 'f32[1,128]{1,0:T(1,128)}', space=vmem, size = 0x200, scoped, tag = 'scratch operand']
  %s0 = inlined_call_operand.vmem [shape: f32[4,128], index: 0, kind: input, shape index: {}]
  %s1 = inlined_call_operand.vmem [shape: s32[1,128], index: 1, kind: input, shape index: {}]
  %s2 = inlined_call_operand.vmem [shape: f32[4,1], index: 2, kind: input, shape index: {}]
  %s3 = inlined_call_operand.hbm [shape: f32[1,1,1], index: 3, kind: output, shape index: {}]
  %s4 = sld [smem:[#allocation0]]
  $region30: #{tpu_custom_call.1} parent=0
    _
  %s6 = ssub.s32 1, %s4
  %s7 = scalar_select 0, %s6, %s4
  $region1: #{tpu_custom_call.1} parent=0
    #allocation3 [shape = 'u8[512]{0}', space=vmem, size = 0x400, scoped, tag = 'output window, operand 0, single buffered']
    #allocation4 [shape = 's32[1]{0}', space=sflag, size = 0x4, scoped, tag = 'scoped memory for tpu_custom_call.1']
    %8 = vsyncpa [#allocation4], 0
    // Predicated region
    $region2: #{tpu_custom_call.1} parent=1 // pred_check
      _
    $region3: #{tpu_custom_call.1} parent=1 // pred_check_branch
      %10 = sbr.rel (0) target = $region5
    $region4: #{tpu_custom_call.1} parent=1 // pred_region
      %s11 = sadd.s32 0, 0
      %p12 = scmp.lt.s32.totalorder %s11, 0
      %s13 = scalar_select %p12, %s11, 0
      %p14 = scmp.lt.s32.totalorder %s13, 0
      %s15 = scalar_select %p14, %s13, 0
      %s16 = smul.addr %s15, 4
      %s17 = scalar_lea.vmem %s0, %s16
      %s18 = sadd.s32 0, 0
      %p19 = scmp.lt.s32.totalorder %s18, 0
      %s20 = scalar_select %p19, %s18, 0
    $region5: #{tpu_custom_call.1} parent=1 // pred_fallthru
      _
    // Predicated region
    $region6: #{tpu_custom_call.1} parent=1 // pred_check
      _
    $region7: #{tpu_custom_call.1} parent=1 // pred_check_branch
      %22 = sbr.rel (0) target = $region9
    $region8: #{tpu_custom_call.1} parent=1 // pred_region
      %s23 = sadd.s32 0, 0
      %p24 = scmp.lt.s32.totalorder %s23, 0
      %s25 = scalar_select %p24, %s23, 0
      %p26 = scmp.lt.s32.totalorder %s25, 0
      %s27 = scalar_select %p26, %s25, 0
      %s28 = scalar_lea.vmem %s1, %s27
      %s29 = sadd.s32 0, 0
      %p30 = scmp.lt.s32.totalorder %s29, 0
      %s31 = scalar_select %p30, %s29, 0
    $region9: #{tpu_custom_call.1} parent=1 // pred_fallthru
      _
    // Predicated region
    $region10: #{tpu_custom_call.1} parent=1 // pred_check
      _
    $region11: #{tpu_custom_call.1} parent=1 // pred_check_branch
      %33 = sbr.rel (0) target = $region13
    $region12: #{tpu_custom_call.1} parent=1 // pred_region
      _
    $region13: #{tpu_custom_call.1} parent=1 // pred_fallthru
      _
    %s34 = sadd.s32 0, 0
    %p35 = scmp.lt.s32.totalorder %s34, 0
    %s36 = scalar_select %p35, %s34, 0
    %p37 = scmp.lt.s32.totalorder %s36, 0
    %s38 = scalar_select %p37, %s36, 0
    %s39 = smul.addr %s38, 4
    %s40 = scalar_lea.vmem %s0, %s39
    %s41 = sadd.s32 0, 0
    %p42 = scmp.lt.s32.totalorder %s41, 0
    %s43 = scalar_select %p42, %s41, 0
    %p44 = scmp.lt.s32.totalorder %s43, 0
    %s45 = scalar_select %p44, %s43, 0
    %s46 = scalar_lea.vmem %s1, %s45
    %s47 = sadd.s32 0, 0
    %p48 = scmp.lt.s32.totalorder %s47, 0
    %s49 = scalar_select %p48, %s47, 0
    %p50 = scmp.lt.s32.totalorder %s49, 0
    %s51 = scalar_select %p50, %s49, 0
    %s52 = smul.addr %s51, 4
    %s53 = scalar_lea.vmem %s0, %s52
    %s54 = sadd.s32 0, 0
    %p55 = scmp.lt.s32.totalorder %s54, 0
    %s56 = scalar_select %p55, %s54, 0
    %s57 = sadd.s32 0, 0
    %p58 = scmp.lt.s32.totalorder %s57, 0
    %s59 = scalar_select %p58, %s57, 0
    %p60 = scmp.lt.s32.totalorder %s59, 0
    %s61 = scalar_select %p60, %s59, 0
    %s62 = scalar_lea.vmem %s1, %s61
    %s63 = sadd.s32 0, 0
    %p64 = scmp.lt.s32.totalorder %s63, 0
    %s65 = scalar_select %p64, %s63, 0
    %p66 = scmp.eq.s32.totalorder 0, 0
    // Predicated region
    $region14: #{tpu_custom_call.1} parent=1 // pred_check
      %p67 = pneg %p66
    $region15: #{tpu_custom_call.1} parent=1 // pred_check_branch
      %69 = sbr.rel (%p67) target = $region17
    $region16: #{tpu_custom_call.1} parent=1 // pred_region
      %70 = vst [vmem:[#allocation2] sm:$0x1] 0.0
    $region17: #{tpu_custom_call.1} parent=1 // pred_fallthru
      _
    %v71 = vld [vmem:[%s53] sm:$0xf]
    %v72 = vld [vmem:[%s62] sm:$0x1]
    %v73 = vld [vmem:[%s2] sm:$0xf]
    %vm74 = vcmask 1043456
    %v75 = vsel %vm74, %v71, -inf
    %v76 = vrot.slane %v75, 4
    %v77 = vmax.f32 %v75, %v76
    %v78 = vrot.slane %v77, 2
    %v79 = vmax.f32 %v77, %v78
    %v80 = vrot.slane %v79, 1
    %v81 = vmax.f32 %v79, %v80
    %v82 = vsub.f32 %v71, %v81
    %v83 = vmul.f32 %v82, 1.442695
    %v84 = vpow.pop %v83
    %v85 = vsel %vm74, %v84, 0.0
    %v86 = vrot.slane %v85, 4
    %v87 = vadd.f32 %v85, %v86
    %v88 = vrot.slane %v87, 2
    %v89 = vadd.f32 %v87, %v88
    %v90 = vrot.slane %v89, 1
    %v91 = vadd.f32 %v89, %v90
    %v92 = vlog2.pop %v91
    %v93 = vmul.f32 %v92, 0.6931472
    %v94 = vsub.f32 %v82, %v93
    %v95 = vlaneseq
    %v96 = vshrl.u32 %v95, 7
    %v97 = vlaneseq
    %v98 = vshrl.u32 %v97, 7
    %v99 = vsub.s32 0, %v98
    %v100 = vrot.slane %v72, %v99
    %vm101 = vcmp.eq.s32.totalorder %v96, %v100
    %v102 = vsel %vm101, 1, 0
    %v103 = vcvt.s32.f32 %v102
    %v104 = vmul.f32 %v94, %v103
    %v105 = vsel %vm74, %v104, 0.0
    %v106 = vrot.slane %v105, 4
    %v107 = vadd.f32 %v105, %v106
    %v108 = vrot.slane %v107, 2
    %v109 = vadd.f32 %v107, %v108
    %v110 = vrot.slane %v109, 1
    %v111 = vadd.f32 %v109, %v110
    %v112 = vmul.f32 %v111, 1.442695
    %v113 = vpow.pop %v112
    %v114 = vsub.f32 1.0, %v113
    %v115 = vmul.f32 %v114, %v114
    %117 = vset.pattern.permute.xlu0 0
    %118 = vperm.xlu0 %117, %v73
    %v119 = vpop.permute.xlu0 %118
    %v121 = vmul.f32 %v119, %v103
    %v122 = vsel %vm74, %v121, 0.0
    %v123 = vrot.slane %v122, 4
    %v124 = vadd.f32 %v122, %v123
    %v125 = vrot.slane %v124, 2
    %v126 = vadd.f32 %v124, %v125
    %v127 = vrot.slane %v126, 1
    %v128 = vadd.f32 %v126, %v127
    %v129 = vsub.f32 0.0, %v128
    %v130 = vmul.f32 %v129, %v115
    %v131 = vmul.f32 %v130, %v111
    %s132 = sadd.s32 0, 0
    %v133 = vlaneseq
    %v134 = vand.u32 %v133, 127
    %s135 = smul.u32 %s132, 128
    %v136 = vstv %s135
    %v137 = vadd.s32 %v134, %v136
    %vm138 = vcmp.lt.s32.totalorder %v137, 32
    %v139 = vsel %vm138, %v131, 0.0
    %v140 = vld [vmem:[#allocation2] sm:$0x1]
    %v141 = vadd.f32 %v140, %v139
    %142 = vst [vmem:[#allocation2] sm:$0x1] %v141
    // Predicated region
    $region18: #{tpu_custom_call.1} parent=1 // pred_check
      %p143 = pneg %p66
    $region19: #{tpu_custom_call.1} parent=1 // pred_check_branch
      %145 = sbr.rel (%p143) target = $region21
    $region20: #{tpu_custom_call.1} parent=1 // pred_region
      %v146 = vld [vmem:[#allocation2] sm:$0x1]
      %vm147 = vcmask 1040384
      %v148 = vsel %vm147, %v146, 0.0
      %149 = vadd.xlane.f32.xlu0 %v148
      %v150 = vpop.xlane.xlu0 %149
      %v151 = vrot.slane %v150, 4
      %v152 = vadd.f32 %v150, %v151
      %v153 = vrot.slane %v152, 2
      %v154 = vadd.f32 %v152, %v153
      %v155 = vrot.slane %v154, 1
      %v156 = vadd.f32 %v154, %v155
      %s157 = vtos %v156
      %v158 = vstv %s157
      %vm159 = vcmask 0
      %160 = vst.msk [vmem:[#allocation3] sm:$0x1] %vm159, %v158
    $region21: #{tpu_custom_call.1} parent=1 // pred_fallthru
      _
    // Predicated region
    $region22: #{tpu_custom_call.1} parent=1 // pred_check
      _
    $region23: #{tpu_custom_call.1} parent=1 // pred_check_branch
      %162 = sbr.rel (0) target = $region25
    $region24: #{tpu_custom_call.1} parent=1 // pred_region
      %s164 = ssub.s32 16, 16
      %165 = vsyncadd [#allocation4], %s164
      %s167 = sshll.u32 [#allocation3], 4
      %s168 = int_to_ptr.vmem [resolvable:$true] %s167
      %170 = dma.vmem_to_hbm [thread:$0]  %s168, 16, %s3, [#allocation4]
    $region25: #{tpu_custom_call.1} parent=1 // pred_fallthru
      _
    // Predicated region
    $region26: #{tpu_custom_call.1} parent=1 // pred_check
      _
    $region27: #{tpu_custom_call.1} parent=1 // pred_check_branch
      %172 = sbr.rel (0) target = $region29
    $region28: #{tpu_custom_call.1} parent=1 // pred_region
      %173 = dma.done [#allocation4], 16
    $region29: #{tpu_custom_call.1} parent=1 // pred_fallthru
      _
    %174 = vsyncpa [#allocation4], 1

</llo_original>
